<compile_context>
chip_gen: v7x
topology: tpu7x:2x2x1
jax: 0.10.0
libtpu: 0.0.40
codegen_flags: <defaults>
</compile_context>

<pallas_src>
import functools

import jax
import jax.numpy as jnp
from jax.experimental import pallas as pl
from jax.experimental.pallas import tpu as pltpu


def _round_up(x, m):
    return (x + m - 1) // m * m


# Quaternion multiplication table: output component c = sum over (a, b, sign)
# of sign * A[a] @ X[b]   (a indexes the norm/propagation component,
# b indexes the feature component).
_QTERMS = (
    ((0, 0, +1), (1, 1, -1), (2, 2, -1), (3, 3, -1)),   # real
    ((0, 1, +1), (1, 0, +1), (2, 3, +1), (3, 2, -1)),   # i
    ((0, 2, +1), (1, 3, -1), (2, 0, +1), (3, 1, +1)),   # j
    ((0, 3, +1), (1, 2, +1), (2, 1, -1), (3, 0, +1)),   # k
)

# _QPACK[a][c] = (b, sign): which signed X component A[a] must be contracted
# against to contribute to output component c.
_QPACK = [[None] * 4 for _ in range(4)]
for _c, _terms in enumerate(_QTERMS):
    for _a, _b, _s in _terms:
        _QPACK[_a][_c] = (_b, _s)


# ----------------------------- kernels ---------------------------------------


def _conv_kernel(a_ref, xs_ref, w_ref, b_ref, o_ref, acc_ref, *, tk):
    """One QuaNetConv_Qin layer: propagate + shared weight + bias + ReLU."""
    k = pl.program_id(1)

    @pl.when(k == 0)
    def _init():
        acc_ref[...] = jnp.zeros_like(acc_ref)

    # Resident Xs is sliced in-kernel (no per-row-block refetch from HBM).
    start = pl.multiple_of(k * tk, tk)
    xs = xs_ref[pl.ds(start, tk), :]
    acc_ref[...] += jnp.dot(a_ref[...], xs, preferred_element_type=jnp.float32)

    @pl.when(k == pl.num_programs(1) - 1)
    def _finish():
        # Block-diagonal shared weight + shared bias + component-wise ReLU,
        # all in the lane-packed layout.
        y = jnp.dot(acc_ref[...].astype(jnp.bfloat16), w_ref[...],
                    preferred_element_type=jnp.float32) + b_ref[...]
        y = jnp.maximum(y, 0.0)          # == (y >= 0) * y for finite y
        o_ref[...] = y.astype(o_ref.dtype)


def _conv_head_kernel(a_ref, xs_ref, w_ref, b_ref, wc_ref, bc_ref, o_ref,
                      acc_ref, *, tk):
    """Last layer with the 1x1-conv head + log_softmax fused into the epilogue."""
    k = pl.program_id(1)

    @pl.when(k == 0)
    def _init():
        acc_ref[...] = jnp.zeros_like(acc_ref)

    start = pl.multiple_of(k * tk, tk)
    xs = xs_ref[pl.ds(start, tk), :]
    acc_ref[...] += jnp.dot(a_ref[...], xs, preferred_element_type=jnp.float32)

    @pl.when(k == pl.num_programs(1) - 1)
    def _finish():
        y = jnp.dot(acc_ref[...].astype(jnp.bfloat16), w_ref[...],
                    preferred_element_type=jnp.float32) + b_ref[...]
        y = jnp.maximum(y, 0.0)
        # TODO(synk): dropout (p=0.5) between the ReLU and the 1x1 conv is an
        # identity in eval mode and is therefore omitted.
        logits = jnp.dot(y.astype(jnp.bfloat16), wc_ref[...],
                         preferred_element_type=jnp.float32) + bc_ref[...]
        m = jnp.max(logits, axis=-1, keepdims=True)
        s = logits - m
        lse = jnp.log(jnp.sum(jnp.exp(s), axis=-1, keepdims=True))
        o_ref[...] = (s - lse).astype(o_ref.dtype)


# ----------------------------- wrappers ---------------------------------------


def _pick_tr(n_pad):
    # Largest row tile that still leaves >=4 row blocks (so the "parallel" axis
    # can shard across both v7x TensorCores with slack), falling back to >=2
    # blocks, then to a single 128-row block for tiny graphs.
    for cand in (512, 256, 128):
        if n_pad % cand == 0 and n_pad // cand >= 4:
            return cand
    for cand in (256, 128):
        if n_pad % cand == 0 and n_pad // cand >= 2:
            return cand
    return 128


def quaternion_conv_layer(A_cat, Xs, Wd, b_packed, *, out_dtype,
                          head_weight=None, head_bias=None):
    """One fused QuaNetConv_Qin layer (optionally with the prediction head).

    A_cat    : (Np, 4*Np)       bf16, [A_real | A_i | A_j | A_k] along columns.
    Xs       : (4*Np, pack_in)  bf16, signed lane-packed component stack.
    Wd       : (pack_in, pack_out) bf16 block-diagonal shared weight.
    b_packed : (1, pack_out)    f32 packed shared bias.
    head_*   : optional (pack_out, l_pad) bf16 / (1, l_pad) f32 for the fused
               1x1-conv + log_softmax head.
    """
    n_pad, kdim = A_cat.shape            # kdim == 4 * n_pad
    pack_in = Xs.shape[1]
    pack_out = Wd.shape[1]
    tr = _pick_tr(n_pad)
    tk = 512                              # 4*Np is always a multiple of 512
    assert kdim % tk == 0
    grid = (n_pad // tr, kdim // tk)

    is_head = head_weight is not None
    out_cols = head_weight.shape[1] if is_head else pack_out

    in_specs = [
        pl.BlockSpec((tr, tk), lambda r, k: (r, k)),            # streamed A
        pl.BlockSpec((kdim, pack_in), lambda r, k: (0, 0)),     # resident Xs
        pl.BlockSpec((pack_in, pack_out), lambda r, k: (0, 0)),  # resident Wd
        pl.BlockSpec((1, pack_out), lambda r, k: (0, 0)),        # resident bias
    ]
    operands = [A_cat, Xs, Wd, b_packed]
    if is_head:
        in_specs += [
            pl.BlockSpec((pack_out, out_cols), lambda r, k: (0, 0)),
            pl.BlockSpec((1, out_cols), lambda r, k: (0, 0)),
        ]
        operands += [head_weight, head_bias]
        kernel = functools.partial(_conv_head_kernel, tk=tk)
    else:
        kernel = functools.partial(_conv_kernel, tk=tk)

    out_bytes = jnp.dtype(out_dtype).itemsize
    vmem_est = (2 * tr * tk * 2                    # A tiles (double-buffered)
                + 2 * kdim * pack_in * 2           # resident Xs
                + 2 * pack_in * pack_out * 2       # Wd
                + 2 * pack_out * 4                 # bias
                + 2 * tr * out_cols * out_bytes    # output tiles
                + tr * pack_in * 4)                # f32 accumulator
    if is_head:
        vmem_est += 2 * pack_out * out_cols * 2 + 2 * out_cols * 4
    vmem_limit = int(min(64 * 1024 * 1024, max(32 * 1024 * 1024, 2 * vmem_est)))

    return pl.pallas_call(
        kernel,
        out_shape=jax.ShapeDtypeStruct((n_pad, out_cols), out_dtype),
        grid_spec=pltpu.PrefetchScalarGridSpec(
            num_scalar_prefetch=0,
            grid=grid,
            in_specs=in_specs,
            out_specs=pl.BlockSpec((tr, out_cols), lambda r, k: (r, 0)),
            scratch_shapes=[pltpu.VMEM((tr, pack_in), jnp.float32)],
        ),
        compiler_params=pltpu.CompilerParams(
            dimension_semantics=("parallel", "arbitrary"),
            vmem_limit_bytes=vmem_limit),
    )(*operands)


def _signed_component_stack(comps, pack_in, layer_sign):
    """Build the signed, lane-packed component stack Xs (4*Np, pack_in) bf16.

    Row block a (the A component), lane block c (the output component) holds
    sign(c,a) * layer_sign * X[b(c,a)], so the Hamilton-product summation is
    performed by the MXU contraction A_cat @ Xs.
    """
    fc = comps[0].shape[1]
    rows = []
    for a in range(4):
        blocks = []
        for c in range(4):
            b, s = _QPACK[a][c]
            x = comps[b]
            blocks.append(x if s * layer_sign > 0 else -x)
        rows.append(jnp.concatenate(blocks, axis=1))
    xs = jnp.concatenate(rows, axis=0)
    if pack_in > 4 * fc:
        xs = jnp.pad(xs, ((0, 0), (0, pack_in - 4 * fc)))
    return xs.astype(jnp.bfloat16)


def quanet_forward(x_real, x_imag_1, x_imag_2, x_imag_3,
                   norm_imag_1, norm_imag_2, norm_imag_3, norm_real,
                   edge_index,
                   cheb_weights, cheb_biases, conv_weight, conv_bias):
    """Forward pass of QuaNet_node_prediction_one_laplacian_Qin (eval mode)."""
    n, _ = x_real.shape
    hidden = cheb_weights[-1].shape[1]
    label_dim = conv_weight.shape[0]
    n_pad = _round_up(n, 128)
    n_layers = len(cheb_weights)

    # Dense per-component propagation matrices A[a][tgt, src] += norm_a[e],
    # concatenated along the contraction axis -> A_cat (Np, 4*Np) in bf16.
    # TODO(synk): the sparse scatter-add (PyG MessagePassing propagate) stays
    # in XLA; block-sparse skipping of empty A tiles via scalar prefetch is the
    # remaining asymptotic optimization and is not implemented here.
    src, tgt = edge_index[0], edge_index[1]
    comps = []
    for norm in (norm_real, norm_imag_1, norm_imag_2, norm_imag_3):
        comps.append(jnp.zeros((n_pad, n_pad), jnp.float32)
                     .at[tgt, src].add(norm.astype(jnp.float32)))
    A_cat = jnp.concatenate(comps, axis=1).astype(jnp.bfloat16)

    def _pad_rows(x):
        return jnp.zeros((n_pad, x.shape[1]), jnp.float32).at[:n].set(
            x.astype(jnp.float32))

    xq = [_pad_rows(x_real), _pad_rows(x_imag_1),
          _pad_rows(x_imag_2), _pad_rows(x_imag_3)]

    l_pad = _round_up(label_dim, 128)
    out = None
    for layer_idx, (W, b) in enumerate(zip(cheb_weights, cheb_biases)):
        fc_in, fc_out = W.shape
        pack_in = _round_up(4 * fc_in, 128)
        pack_out = _round_up(4 * fc_out, 128)

        # The PyTorch layer negates the norms it receives and hands the
        # negated copy to the next layer; fold that alternating sign into Xs.
        layer_sign = -1 if layer_idx % 2 == 0 else 1
        Xs = _signed_component_stack(xq, pack_in, layer_sign)

        # Shared weight as a block-diagonal (4*F_in -> 4*F_out) matrix so one
        # MXU dot applies it to all four lane-packed components; shared bias
        # tiled into the same packed layout.
        Wd = jnp.zeros((pack_in, pack_out), jnp.float32)
        bp = jnp.zeros((1, pack_out), jnp.float32)
        for c in range(4):
            Wd = Wd.at[c * fc_in:(c + 1) * fc_in,
                       c * fc_out:(c + 1) * fc_out].set(W.astype(jnp.float32))
            bp = bp.at[0, c * fc_out:(c + 1) * fc_out].set(b.astype(jnp.float32))
        Wd = Wd.astype(jnp.bfloat16)

        if layer_idx == n_layers - 1:
            # Head: 1x1 Conv1d over cat(real,i,j,k) == Y_packed @ conv_weight.T,
            # fused with log_softmax into the conv epilogue.  Padded class
            # columns get a -1e30 bias so they vanish under log_softmax.
            wc = jnp.zeros((pack_out, l_pad), jnp.float32)
            wc = wc.at[:4 * hidden, :label_dim].set(
                conv_weight.astype(jnp.float32).T)
            bc = jnp.full((1, l_pad), -1e30, jnp.float32)
            bc = bc.at[0, :label_dim].set(conv_bias.astype(jnp.float32))
            out = quaternion_conv_layer(
                A_cat, Xs, Wd, bp, out_dtype=jnp.float32,
                head_weight=wc.astype(jnp.bfloat16), head_bias=bc)
        else:
            y = quaternion_conv_layer(A_cat, Xs, Wd, bp, out_dtype=jnp.bfloat16)
            xq = [y[:, c * fc_out:(c + 1) * fc_out] for c in range(4)]

    return out[:n, :label_dim]


# ------------------------- pure-JAX reference (for the check) -----------------


def _ref_propagate(x, norm, edge_index, n):
    src, tgt = edge_index[0], edge_index[1]
    msg = norm[:, None] * x[src]
    return jnp.zeros((n, x.shape[1]), jnp.float32).at[tgt].add(msg)


def _ref_relu(x):
    return (x >= 0).astype(jnp.float32) * x


def quanet_forward_reference(x_real, x_imag_1, x_imag_2, x_imag_3,
                             norm_imag_1, norm_imag_2, norm_imag_3, norm_real,
                             edge_index,
                             cheb_weights, cheb_biases, conv_weight, conv_bias):
    hp = jax.lax.Precision.HIGHEST
    n = x_real.shape[0]
    xr, xi, xj, xk = x_real, x_imag_1, x_imag_2, x_imag_3
    nr, ni, nj, nk = norm_real, norm_imag_1, norm_imag_2, norm_imag_3
    for W, b in zip(cheb_weights, cheb_biases):
        nr, ni, nj, nk = -nr, -ni, -nj, -nk
        P = functools.partial(_ref_propagate, edge_index=edge_index, n=n)
        t_r = P(xr, nr) - P(xi, ni) - P(xj, nj) - P(xk, nk)
        t_i = P(xi, nr) + P(xr, ni) + P(xk, nj) - P(xj, nk)
        t_j = P(xj, nr) - P(xk, ni) + P(xr, nj) + P(xi, nk)
        t_k = P(xk, nr) + P(xj, ni) - P(xi, nj) + P(xr, nk)
        xr = _ref_relu(jnp.dot(t_r, W, precision=hp) + b)
        xi = _ref_relu(jnp.dot(t_i, W, precision=hp) + b)
        xj = _ref_relu(jnp.dot(t_j, W, precision=hp) + b)
        xk = _ref_relu(jnp.dot(t_k, W, precision=hp) + b)
    x = jnp.concatenate([xr, xi, xj, xk], axis=-1)
    logits = jnp.dot(x, conv_weight.T, precision=hp) + conv_bias
    return jax.nn.log_softmax(logits, axis=1)


# ------------------------------------ demo ------------------------------------


if __name__ == "__main__":

    def _bf(x):
        # Round-trip to bf16 so the f32 reference and the bf16 kernel start
        # from identical operand values (isolates true kernel error).
        return x.astype(jnp.bfloat16).astype(jnp.float32)

    def run_case(seed, num_nodes, num_features, hidden, label_dim, num_edges):
        key = jax.random.PRNGKey(seed)
        keys = jax.random.split(key, 12)

        xr = _bf(jax.random.normal(keys[0], (num_nodes, num_features), jnp.float32))
        xi = _bf(jax.random.normal(keys[1], (num_nodes, num_features), jnp.float32))
        xj = _bf(jax.random.normal(keys[2], (num_nodes, num_features), jnp.float32))
        xk = _bf(jax.random.normal(keys[3], (num_nodes, num_features), jnp.float32))

        edge_index = jax.random.randint(keys[4], (2, num_edges), 0, num_nodes,
                                        jnp.int32)
        norm_r = _bf(jax.random.normal(keys[5], (num_edges,), jnp.float32))
        norm_i = _bf(jax.random.normal(keys[6], (num_edges,), jnp.float32))
        norm_j = _bf(jax.random.normal(keys[7], (num_edges,), jnp.float32))
        norm_k = _bf(jax.random.normal(keys[8], (num_edges,), jnp.float32))

        w_scale = 0.2
        cheb_weights = [
            _bf(w_scale * jax.random.normal(keys[9], (num_features, hidden),
                                            jnp.float32)),
            _bf(w_scale * jax.random.normal(keys[10], (hidden, hidden),
                                            jnp.float32)),
        ]
        cheb_biases = [
            _bf(0.1 * jnp.ones((hidden,), jnp.float32)),
            _bf(-0.05 * jnp.ones((hidden,), jnp.float32)),
        ]
        conv_weight = _bf(w_scale * jax.random.normal(
            keys[11], (label_dim, 4 * hidden), jnp.float32))
        conv_bias = _bf(jnp.linspace(-0.1, 0.1, label_dim, dtype=jnp.float32))

        out = quanet_forward(xr, xi, xj, xk, norm_i, norm_j, norm_k, norm_r,
                             edge_index, cheb_weights, cheb_biases,
                             conv_weight, conv_bias)
        out = jax.block_until_ready(out)

        ref = quanet_forward_reference(xr, xi, xj, xk, norm_i, norm_j, norm_k,
                                       norm_r, edge_index, cheb_weights,
                                       cheb_biases, conv_weight, conv_bias)
        ref = jax.block_until_ready(ref)

        assert out.shape == (num_nodes, label_dim), out.shape
        if not bool(jnp.allclose(out, ref, rtol=4e-2, atol=4e-2)):
            max_err = float(jnp.max(jnp.abs(out - ref)))
            raise AssertionError(
                f"case(n={num_nodes}) mismatch vs reference, "
                f"max abs err = {max_err}")

    # Small case (single k-step) and a larger case exercising multiple row
    # blocks and multiple contraction steps.
    run_case(0, num_nodes=24, num_features=8, hidden=16, label_dim=4,
             num_edges=60)
    run_case(1, num_nodes=200, num_features=8, hidden=16, label_dim=4,
             num_edges=800)
    print("KERNEL_OK")
</pallas_src>

<mosaic_0001>
module attributes {stable_mosaic.version = 11 : i64} {
  func.func @_conv_kernel(%arg0: i32, %arg1: i32, %arg2: memref<128x512xbf16, #tpu.memory_space<vmem>>, %arg3: memref<512x128xbf16, #tpu.memory_space<vmem>>, %arg4: memref<128x128xbf16, #tpu.memory_space<vmem>>, %arg5: memref<1x128xf32, #tpu.memory_space<vmem>>, %arg6: memref<128x128xbf16, #tpu.memory_space<vmem>>, %arg7: memref<128x128xf32, #tpu.memory_space<vmem>>) attributes {dimension_semantics = [#tpu.dimension_semantics<parallel>, #tpu.dimension_semantics<arbitrary>], iteration_bounds = array<i64: 1, 1>, scalar_prefetch = 0 : i64, scratch_operands = 1 : i64, tpu.core_type = #tpu.core_type<tc>, window_params = [{transform_indices = @transform_0, window_bounds = array<i64: 128, 512>}, {pipeline_mode = #tpu.pipeline_mode<synchronous>, transform_indices = @transform_1, window_bounds = array<i64: 512, 128>}, {pipeline_mode = #tpu.pipeline_mode<synchronous>, transform_indices = @transform_2, window_bounds = array<i64: 128, 128>}, {pipeline_mode = #tpu.pipeline_mode<synchronous>, transform_indices = @transform_3, window_bounds = array<i64: 1, 128>}, {transform_indices = @transform_4, window_bounds = array<i64: 128, 128>}]} {
    %c0_i32 = arith.constant 0 : i32
    %0 = arith.cmpi eq, %arg1, %c0_i32 : i32
    %1 = arith.extui %0 : i1 to i32
    %c0_i32_0 = arith.constant 0 : i32
    %2 = arith.cmpi ne, %1, %c0_i32_0 : i32
    scf.if %2 {
      %cst_9 = arith.constant 0.000000e+00 : f32
      %15 = vector.broadcast %cst_9 : f32 to vector<128x128xf32>
      %c0_10 = arith.constant 0 : index
      %c0_11 = arith.constant 0 : index
      %16 = vector.load %arg7[%c0_10, %c0_11] : memref<128x128xf32, #tpu.memory_space<vmem>>, vector<128x128xf32>
      tpu.vector_store %arg7[%c0_10, %c0_11], %15 {strides = array<i32>} : memref<128x128xf32, #tpu.memory_space<vmem>>, vector<128x128xf32>,
    } else {
    }
    %c512_i32 = arith.constant 512 : i32
    %3 = arith.muli %arg1, %c512_i32 : i32
    %4 = tpu.assume_multiple %3, 512 : i32
    %5 = arith.index_cast %4 : i32 to index
    %c0 = arith.constant 0 : index
    %6 = vector.load %arg3[%5, %c0] : memref<512x128xbf16, #tpu.memory_space<vmem>>, vector<512x128xbf16>
    %c0_1 = arith.constant 0 : index
    %c0_2 = arith.constant 0 : index
    %7 = vector.load %arg7[%c0_1, %c0_2] : memref<128x128xf32, #tpu.memory_space<vmem>>, vector<128x128xf32>
    %c0_3 = arith.constant 0 : index
    %c0_4 = arith.constant 0 : index
    %8 = vector.load %arg2[%c0_3, %c0_4] : memref<128x512xbf16, #tpu.memory_space<vmem>>, vector<128x512xbf16>
    %cst = arith.constant dense<0.000000e+00> : vector<128x128xf32>
    %9 = tpu.matmul %8, %6, %cst {dimension_numbers = #tpu.dot_dimension_numbers<[1], [0], [0], [1], [0, 0, 1, 1], [], []>} : vector<128x512xbf16>, vector<512x128xbf16>, vector<128x128xf32> -> vector<128x128xf32>
    %10 = arith.addf %7, %9 : vector<128x128xf32>
    %c0_5 = arith.constant 0 : index
    %c0_6 = arith.constant 0 : index
    %11 = vector.load %arg7[%c0_5, %c0_6] : memref<128x128xf32, #tpu.memory_space<vmem>>, vector<128x128xf32>
    tpu.vector_store %arg7[%c0_5, %c0_6], %10 {strides = array<i32>} : memref<128x128xf32, #tpu.memory_space<vmem>>, vector<128x128xf32>,
    %c0_i32_7 = arith.constant 0 : i32
    %12 = arith.cmpi eq, %arg1, %c0_i32_7 : i32
    %13 = arith.extui %12 : i1 to i32
    %c0_i32_8 = arith.constant 0 : i32
    %14 = arith.cmpi ne, %13, %c0_i32_8 : i32
    scf.if %14 {
      %c0_9 = arith.constant 0 : index
      %c0_10 = arith.constant 0 : index
      %15 = vector.load %arg7[%c0_9, %c0_10] : memref<128x128xf32, #tpu.memory_space<vmem>>, vector<128x128xf32>
      %16 = arith.truncf %15 : vector<128x128xf32> to vector<128x128xbf16>
      %c0_11 = arith.constant 0 : index
      %c0_12 = arith.constant 0 : index
      %17 = vector.load %arg4[%c0_11, %c0_12] : memref<128x128xbf16, #tpu.memory_space<vmem>>, vector<128x128xbf16>
      %cst_13 = arith.constant dense<0.000000e+00> : vector<128x128xf32>
      %18 = tpu.matmul %16, %17, %cst_13 {dimension_numbers = #tpu.dot_dimension_numbers<[1], [0], [0], [1], [0, 0, 1, 1], [], []>} : vector<128x128xbf16>, vector<128x128xbf16>, vector<128x128xf32> -> vector<128x128xf32>
      %c0_14 = arith.constant 0 : index
      %c0_15 = arith.constant 0 : index
      %19 = vector.load %arg5[%c0_14, %c0_15] : memref<1x128xf32, #tpu.memory_space<vmem>>, vector<1x128xf32>
      %20 = vector.broadcast %19 : vector<1x128xf32> to vector<128x128xf32>
      %21 = arith.addf %18, %20 : vector<128x128xf32>
      %cst_16 = arith.constant 0.000000e+00 : f32
      %22 = vector.broadcast %cst_16 : f32 to vector<128x128xf32>
      %23 = arith.maximumf %21, %22 : vector<128x128xf32>
      %24 = arith.truncf %23 : vector<128x128xf32> to vector<128x128xbf16>
      %c0_17 = arith.constant 0 : index
      %c0_18 = arith.constant 0 : index
      %25 = vector.load %arg6[%c0_17, %c0_18] : memref<128x128xbf16, #tpu.memory_space<vmem>>, vector<128x128xbf16>
      tpu.vector_store %arg6[%c0_17, %c0_18], %24 {strides = array<i32>} : memref<128x128xbf16, #tpu.memory_space<vmem>>, vector<128x128xbf16>,
    } else {
    }
    return
  }
  func.func @transform_0(%arg0: i32, %arg1: i32) -> (i32, i32) {
    %c0_i32 = arith.constant 0 : i32
    return %arg0, %arg1 : i32, i32
  }
  func.func @transform_1(%arg0: i32, %arg1: i32) -> (i32, i32) {
    %c0_i32 = arith.constant 0 : i32
    %c0_i32_0 = arith.constant 0 : i32
    %c0_i32_1 = arith.constant 0 : i32
    return %c0_i32, %c0_i32_0 : i32, i32
  }
  func.func @transform_2(%arg0: i32, %arg1: i32) -> (i32, i32) {
    %c0_i32 = arith.constant 0 : i32
    %c0_i32_0 = arith.constant 0 : i32
    %c0_i32_1 = arith.constant 0 : i32
    return %c0_i32, %c0_i32_0 : i32, i32
  }
  func.func @transform_3(%arg0: i32, %arg1: i32) -> (i32, i32) {
    %c0_i32 = arith.constant 0 : i32
    %c0_i32_0 = arith.constant 0 : i32
    %c0_i32_1 = arith.constant 0 : i32
    return %c0_i32, %c0_i32_0 : i32, i32
  }
  func.func @transform_4(%arg0: i32, %arg1: i32) -> (i32, i32) {
    %c0_i32 = arith.constant 0 : i32
    %c0_i32_0 = arith.constant 0 : i32
    return %arg0, %c0_i32 : i32, i32
  }
}

</mosaic_0001>

<llo_original>
// kernel: tpu_custom_call.1
$region0: #{tpu_custom_call.1}
  #allocation0 [shape = 'u32[]', space=smem, size = 0x4, offset = 0x4, fixed_abs, tag = 'smem constant byte address 0x4 - core index']
  #allocation1 [shape = 'u32[144,128]{1,0:T(1,128)}', space=vmem, size = 0x12000, scoped, tag = 'internal scratch']
  #allocation2 [shape = 'f32[128,128]{1,0:T(8,128)}', space=vmem, size = 0x10000, scoped, tag = 'scratch operand']
  %s0 = inlined_call_operand.hbm [shape: bf16[128,512], index: 0, kind: input, shape index: {}]
  %s1 = inlined_call_operand.hbm [shape: bf16[512,128], index: 1, kind: input, shape index: {}]
  %s2 = inlined_call_operand.hbm [shape: bf16[128,128], index: 2, kind: input, shape index: {}]
  %s3 = inlined_call_operand.vmem [shape: f32[1,128], index: 3, kind: input, shape index: {}]
  %s4 = inlined_call_operand.hbm [shape: bf16[128,128], index: 4, kind: output, shape index: {}]
  %s5 = sld [smem:[#allocation0]]
  $region46: #{tpu_custom_call.1} parent=0
    _
  %s7 = ssub.s32 1, %s5
  %s8 = scalar_select 0, %s7, %s5
  $region1: #{tpu_custom_call.1} parent=0
    #allocation3 [shape = 'u8[131072]{0}', space=vmem, size = 0x20000, scoped, tag = 'input window, operand 0, single buffered']
    #allocation4 [shape = 's32[1]{0}', space=sflag, size = 0x4, scoped, tag = 'scoped memory for tpu_custom_call.1']
    #allocation5 [shape = 's32[1]{0}', space=sflag, size = 0x4, scoped, tag = 'scoped memory for tpu_custom_call.1']
    #allocation6 [shape = 'u8[131072]{0}', space=vmem, size = 0x20000, scoped, tag = 'input window, operand 1, single buffered']
    #allocation7 [shape = 's32[1]{0}', space=sflag, size = 0x4, scoped, tag = 'scoped memory for tpu_custom_call.1']
    #allocation8 [shape = 'u8[32768]{0}', space=vmem, size = 0x8000, scoped, tag = 'input window, operand 2, single buffered']
    #allocation9 [shape = 'u8[32768]{0}', space=vmem, size = 0x8000, scoped, tag = 'output window, operand 0, single buffered']
    %9 = vsyncpa [#allocation4], 0
    %10 = vsyncpa [#allocation7], 0
    %11 = vsyncpa [#allocation5], 0
    // Predicated region
    $region2: #{tpu_custom_call.1} parent=1 // pred_check
      _
    $region3: #{tpu_custom_call.1} parent=1 // pred_check_branch
      %13 = sbr.rel (0) target = $region5
    $region4: #{tpu_custom_call.1} parent=1 // pred_region
      %s15 = ssub.s32 4096, 4096
      %16 = vsyncadd [#allocation4], %s15
      %s17 = sshll.u32 [#allocation3], 4
      %s18 = int_to_ptr.vmem [resolvable:$true] %s17
      %23 = dma.hbm_to_vmem [thread:$0]  %s0, 4096, %s18, [#allocation4], 256, 256, 16
    $region5: #{tpu_custom_call.1} parent=1 // pred_fallthru
      _
    // Predicated region
    $region6: #{tpu_custom_call.1} parent=1 // pred_check
      _
    $region7: #{tpu_custom_call.1} parent=1 // pred_check_branch
      %25 = sbr.rel (0) target = $region9
    $region8: #{tpu_custom_call.1} parent=1 // pred_region
      %s27 = ssub.s32 4096, 4096
      %28 = vsyncadd [#allocation7], %s27
      %s29 = sshll.u32 [#allocation6], 4
      %s30 = int_to_ptr.vmem [resolvable:$true] %s29
      %35 = dma.hbm_to_vmem [thread:$0]  %s1, 4096, %s30, [#allocation7], 64, 64, 4
    $region9: #{tpu_custom_call.1} parent=1 // pred_fallthru
      _
    // Predicated region
    $region10: #{tpu_custom_call.1} parent=1 // pred_check
      _
    $region11: #{tpu_custom_call.1} parent=1 // pred_check_branch
      %37 = sbr.rel (0) target = $region13
    $region12: #{tpu_custom_call.1} parent=1 // pred_region
      %s39 = ssub.s32 1024, 1024
      %40 = vsyncadd [#allocation7], %s39
      %s41 = sshll.u32 [#allocation8], 4
      %s42 = int_to_ptr.vmem [resolvable:$true] %s41
      %47 = dma.hbm_to_vmem [thread:$0]  %s2, 1024, %s42, [#allocation7], 64, 64, 4
    $region13: #{tpu_custom_call.1} parent=1 // pred_fallthru
      _
    // Predicated region
    $region14: #{tpu_custom_call.1} parent=1 // pred_check
      _
    $region15: #{tpu_custom_call.1} parent=1 // pred_check_branch
      %49 = sbr.rel (0) target = $region17
    $region16: #{tpu_custom_call.1} parent=1 // pred_region
      _
    $region17: #{tpu_custom_call.1} parent=1 // pred_fallthru
      _
    // Predicated region
    $region18: #{tpu_custom_call.1} parent=1 // pred_check
      _
    $region19: #{tpu_custom_call.1} parent=1 // pred_check_branch
      %51 = sbr.rel (0) target = $region21
    $region20: #{tpu_custom_call.1} parent=1 // pred_region
      %52 = dma.done [#allocation4], 4096
    $region21: #{tpu_custom_call.1} parent=1 // pred_fallthru
      _
    // Predicated region
    $region22: #{tpu_custom_call.1} parent=1 // pred_check
      _
    $region23: #{tpu_custom_call.1} parent=1 // pred_check_branch
      %54 = sbr.rel (0) target = $region25
    $region24: #{tpu_custom_call.1} parent=1 // pred_region
      %55 = dma.done [#allocation7], 4096
    $region25: #{tpu_custom_call.1} parent=1 // pred_fallthru
      _
    // Predicated region
    $region26: #{tpu_custom_call.1} parent=1 // pred_check
      _
    $region27: #{tpu_custom_call.1} parent=1 // pred_check_branch
      %57 = sbr.rel (0) target = $region29
    $region28: #{tpu_custom_call.1} parent=1 // pred_region
      %58 = dma.done [#allocation7], 1024
    $region29: #{tpu_custom_call.1} parent=1 // pred_fallthru
      _
    %p60 = scmp.eq.s32.totalorder 0, 0
    // Predicated region
    $region30: #{tpu_custom_call.1} parent=1 // pred_check
      %p61 = pneg %p60
    $region31: #{tpu_custom_call.1} parent=1 // pred_check_branch
      %63 = sbr.rel (%p61) target = $region33
    $region32: #{tpu_custom_call.1} parent=1 // pred_region
      %64 = vst [vmem:[#allocation2] sm:$0xff] 0.0
      %65 = vst [vmem:[#allocation2 + $0x8] sm:$0xff] 0.0
      %66 = vst [vmem:[#allocation2 + $0x10] sm:$0xff] 0.0
      %67 = vst [vmem:[#allocation2 + $0x18] sm:$0xff] 0.0
      %68 = vst [vmem:[#allocation2 + $0x20] sm:$0xff] 0.0
      %69 = vst [vmem:[#allocation2 + $0x28] sm:$0xff] 0.0
      %70 = vst [vmem:[#allocation2 + $0x30] sm:$0xff] 0.0
      %71 = vst [vmem:[#allocation2 + $0x38] sm:$0xff] 0.0
      %72 = vst [vmem:[#allocation2 + $0x40] sm:$0xff] 0.0
      %73 = vst [vmem:[#allocation2 + $0x48] sm:$0xff] 0.0
      %74 = vst [vmem:[#allocation2 + $0x50] sm:$0xff] 0.0
      %75 = vst [vmem:[#allocation2 + $0x58] sm:$0xff] 0.0
      %76 = vst [vmem:[#allocation2 + $0x60] sm:$0xff] 0.0
      %77 = vst [vmem:[#allocation2 + $0x68] sm:$0xff] 0.0
      %78 = vst [vmem:[#allocation2 + $0x70] sm:$0xff] 0.0
      %79 = vst [vmem:[#allocation2 + $0x78] sm:$0xff] 0.0
    $region33: #{tpu_custom_call.1} parent=1 // pred_fallthru
      _
    %s80 = smul.u32 0, 512
    %s81 = sshra.s32 %s80, 3
    %s82 = sand.u32 %s80, 7
    %s83 = smul.addr %s81, 4
    %s84 = scalar_lea.vmem [#allocation6], %s83
    %v85 = vld [vmem:[%s84] sm:$0xf]
    %v86 = vld [vmem:[%s84 + $0x4] sm:$0xf]
    %v87 = vld [vmem:[%s84 + $0x8] sm:$0xf]
    %v88 = vld [vmem:[%s84 + $0xc] sm:$0xf]
    %v89 = vld [vmem:[%s84 + $0x10] sm:$0xf]
    %v90 = vld [vmem:[%s84 + $0x14] sm:$0xf]
    %v91 = vld [vmem:[%s84 + $0x18] sm:$0xf]
    %v92 = vld [vmem:[%s84 + $0x1c] sm:$0xf]
    %v93 = vld [vmem:[%s84 + $0x20] sm:$0xf]
    %v94 = vld [vmem:[%s84 + $0x24] sm:$0xf]
    %v95 = vld [vmem:[%s84 + $0x28] sm:$0xf]
    %v96 = vld [vmem:[%s84 + $0x2c] sm:$0xf]
    %v97 = vld [vmem:[%s84 + $0x30] sm:$0xf]
    %v98 = vld [vmem:[%s84 + $0x34] sm:$0xf]
    %v99 = vld [vmem:[%s84 + $0x38] sm:$0xf]
    %v100 = vld [vmem:[%s84 + $0x3c] sm:$0xf]
    %v101 = vld [vmem:[%s84 + $0x40] sm:$0xf]
    %v102 = vld [vmem:[%s84 + $0x44] sm:$0xf]
    %v103 = vld [vmem:[%s84 + $0x48] sm:$0xf]
    %v104 = vld [vmem:[%s84 + $0x4c] sm:$0xf]
    %v105 = vld [vmem:[%s84 + $0x50] sm:$0xf]
    %v106 = vld [vmem:[%s84 + $0x54] sm:$0xf]
    %v107 = vld [vmem:[%s84 + $0x58] sm:$0xf]
    %v108 = vld [vmem:[%s84 + $0x5c] sm:$0xf]
    %v109 = vld [vmem:[%s84 + $0x60] sm:$0xf]
    %v110 = vld [vmem:[%s84 + $0x64] sm:$0xf]
    %v111 = vld [vmem:[%s84 + $0x68] sm:$0xf]
    %v112 = vld [vmem:[%s84 + $0x6c] sm:$0xf]
    %v113 = vld [vmem:[%s84 + $0x70] sm:$0xf]
    %v114 = vld [vmem:[%s84 + $0x74] sm:$0xf]
    %v115 = vld [vmem:[%s84 + $0x78] sm:$0xf]
    %v116 = vld [vmem:[%s84 + $0x7c] sm:$0xf]
    %v117 = vld [vmem:[%s84 + $0x80] sm:$0xf]
    %v118 = vld [vmem:[%s84 + $0x84] sm:$0xf]
    %v119 = vld [vmem:[%s84 + $0x88] sm:$0xf]
    %v120 = vld [vmem:[%s84 + $0x8c] sm:$0xf]
    %v121 = vld [vmem:[%s84 + $0x90] sm:$0xf]
    %v122 = vld [vmem:[%s84 + $0x94] sm:$0xf]
    %v123 = vld [vmem:[%s84 + $0x98] sm:$0xf]
    %v124 = vld [vmem:[%s84 + $0x9c] sm:$0xf]
    %v125 = vld [vmem:[%s84 + $0xa0] sm:$0xf]
    %v126 = vld [vmem:[%s84 + $0xa4] sm:$0xf]
    %v127 = vld [vmem:[%s84 + $0xa8] sm:$0xf]
    %v128 = vld [vmem:[%s84 + $0xac] sm:$0xf]
    %v129 = vld [vmem:[%s84 + $0xb0] sm:$0xf]
    %v130 = vld [vmem:[%s84 + $0xb4] sm:$0xf]
    %v131 = vld [vmem:[%s84 + $0xb8] sm:$0xf]
    %v132 = vld [vmem:[%s84 + $0xbc] sm:$0xf]
    %v133 = vld [vmem:[%s84 + $0xc0] sm:$0xf]
    %v134 = vld [vmem:[%s84 + $0xc4] sm:$0xf]
    %v135 = vld [vmem:[%s84 + $0xc8] sm:$0xf]
    %v136 = vld [vmem:[%s84 + $0xcc] sm:$0xf]
    %v137 = vld [vmem:[%s84 + $0xd0] sm:$0xf]
    %v138 = vld [vmem:[%s84 + $0xd4] sm:$0xf]
    %v139 = vld [vmem:[%s84 + $0xd8] sm:$0xf]
    %v140 = vld [vmem:[%s84 + $0xdc] sm:$0xf]
    %v141 = vld [vmem:[%s84 + $0xe0] sm:$0xf]
    %v142 = vld [vmem:[%s84 + $0xe4] sm:$0xf]
    %v143 = vld [vmem:[%s84 + $0xe8] sm:$0xf]
    %v144 = vld [vmem:[%s84 + $0xec] sm:$0xf]
    %v145 = vld [vmem:[%s84 + $0xf0] sm:$0xf]
    %v146 = vld [vmem:[%s84 + $0xf4] sm:$0xf]
    %v147 = vld [vmem:[%s84 + $0xf8] sm:$0xf]
    %v148 = vld [vmem:[%s84 + $0xfc] sm:$0xf]
    %v149 = vld [vmem:[#allocation2] sm:$0xff]
    %v150 = vld [vmem:[#allocation2 + $0x8] sm:$0xff]
    %v151 = vld [vmem:[#allocation2 + $0x10] sm:$0xff]
    %v152 = vld [vmem:[#allocation2 + $0x18] sm:$0xff]
    %v153 = vld [vmem:[#allocation2 + $0x20] sm:$0xff]
    %v154 = vld [vmem:[#allocation2 + $0x28] sm:$0xff]
    %v155 = vld [vmem:[#allocation2 + $0x30] sm:$0xff]
    %v156 = vld [vmem:[#allocation2 + $0x38] sm:$0xff]
    %v157 = vld [vmem:[#allocation2 + $0x40] sm:$0xff]
    %v158 = vld [vmem:[#allocation2 + $0x48] sm:$0xff]
    %v159 = vld [vmem:[#allocation2 + $0x50] sm:$0xff]
    %v160 = vld [vmem:[#allocation2 + $0x58] sm:$0xff]
    %v161 = vld [vmem:[#allocation2 + $0x60] sm:$0xff]
    %v162 = vld [vmem:[#allocation2 + $0x68] sm:$0xff]
    %v163 = vld [vmem:[#allocation2 + $0x70] sm:$0xff]
    %v164 = vld [vmem:[#allocation2 + $0x78] sm:$0xff]
    %v165 = vld [vmem:[#allocation3] sm:$0xff]
    %v166 = vld [vmem:[#allocation3 + $0x8] sm:$0xff]
    %v167 = vld [vmem:[#allocation3 + $0x10] sm:$0xff]
    %v168 = vld [vmem:[#allocation3 + $0x18] sm:$0xff]
    %v169 = vld [vmem:[#allocation3 + $0x20] sm:$0xff]
    %v170 = vld [vmem:[#allocation3 + $0x28] sm:$0xff]
    %v171 = vld [vmem:[#allocation3 + $0x30] sm:$0xff]
    %v172 = vld [vmem:[#allocation3 + $0x38] sm:$0xff]
    %v173 = vld [vmem:[#allocation3 + $0x40] sm:$0xff]
    %v174 = vld [vmem:[#allocation3 + $0x48] sm:$0xff]
    %v175 = vld [vmem:[#allocation3 + $0x50] sm:$0xff]
    %v176 = vld [vmem:[#allocation3 + $0x58] sm:$0xff]
    %v177 = vld [vmem:[#allocation3 + $0x60] sm:$0xff]
    %v178 = vld [vmem:[#allocation3 + $0x68] sm:$0xff]
    %v179 = vld [vmem:[#allocation3 + $0x70] sm:$0xff]
    %v180 = vld [vmem:[#allocation3 + $0x78] sm:$0xff]
    %v181 = vld [vmem:[#allocation3 + $0x80] sm:$0xff]
    %v182 = vld [vmem:[#allocation3 + $0x88] sm:$0xff]
    %v183 = vld [vmem:[#allocation3 + $0x90] sm:$0xff]
    %v184 = vld [vmem:[#allocation3 + $0x98] sm:$0xff]
    %v185 = vld [vmem:[#allocation3 + $0xa0] sm:$0xff]
    %v186 = vld [vmem:[#allocation3 + $0xa8] sm:$0xff]
    %v187 = vld [vmem:[#allocation3 + $0xb0] sm:$0xff]
    %v188 = vld [vmem:[#allocation3 + $0xb8] sm:$0xff]
    %v189 = vld [vmem:[#allocation3 + $0xc0] sm:$0xff]
    %v190 = vld [vmem:[#allocation3 + $0xc8] sm:$0xff]
    %v191 = vld [vmem:[#allocation3 + $0xd0] sm:$0xff]
    %v192 = vld [vmem:[#allocation3 + $0xd8] sm:$0xff]
    %v193 = vld [vmem:[#allocation3 + $0xe0] sm:$0xff]
    %v194 = vld [vmem:[#allocation3 + $0xe8] sm:$0xff]
    %v195 = vld [vmem:[#allocation3 + $0xf0] sm:$0xff]
    %v196 = vld [vmem:[#allocation3 + $0xf8] sm:$0xff]
    %v229 = vunpack.c.l.b16 %v165
    %v230 = vunpack.c.h.b16 %v165
    %v231 = vunpack.c.l.b16 %v166
    %v232 = vunpack.c.h.b16 %v166
    %v233 = vunpack.c.l.b16 %v167
    %v234 = vunpack.c.h.b16 %v167
    %v235 = vunpack.c.l.b16 %v168
    %v236 = vunpack.c.h.b16 %v168
    %v237 = vunpack.c.l.b16 %v169
    %v238 = vunpack.c.h.b16 %v169
    %v239 = vunpack.c.l.b16 %v170
    %v240 = vunpack.c.h.b16 %v170
    %v241 = vunpack.c.l.b16 %v171
    %v242 = vunpack.c.h.b16 %v171
    %v243 = vunpack.c.l.b16 %v172
    %v244 = vunpack.c.h.b16 %v172
    %v245 = vunpack.c.l.b16 %v173
    %v246 = vunpack.c.h.b16 %v173
    %v247 = vunpack.c.l.b16 %v174
    %v248 = vunpack.c.h.b16 %v174
    %v249 = vunpack.c.l.b16 %v175
    %v250 = vunpack.c.h.b16 %v175
    %v251 = vunpack.c.l.b16 %v176
    %v252 = vunpack.c.h.b16 %v176
    %v253 = vunpack.c.l.b16 %v177
    %v254 = vunpack.c.h.b16 %v177
    %v255 = vunpack.c.l.b16 %v178
    %v256 = vunpack.c.h.b16 %v178
    %v257 = vunpack.c.l.b16 %v179
    %v258 = vunpack.c.h.b16 %v179
    %v259 = vunpack.c.l.b16 %v180
    %v260 = vunpack.c.h.b16 %v180
    %v261 = vunpack.c.l.b16 %v181
    %v262 = vunpack.c.h.b16 %v181
    %v263 = vunpack.c.l.b16 %v182
    %v264 = vunpack.c.h.b16 %v182
    %v265 = vunpack.c.l.b16 %v183
    %v266 = vunpack.c.h.b16 %v183
    %v267 = vunpack.c.l.b16 %v184
    %v268 = vunpack.c.h.b16 %v184
    %v269 = vunpack.c.l.b16 %v185
    %v270 = vunpack.c.h.b16 %v185
    %v271 = vunpack.c.l.b16 %v186
    %v272 = vunpack.c.h.b16 %v186
    %v273 = vunpack.c.l.b16 %v187
    %v274 = vunpack.c.h.b16 %v187
    %v275 = vunpack.c.l.b16 %v188
    %v276 = vunpack.c.h.b16 %v188
    %v277 = vunpack.c.l.b16 %v189
    %v278 = vunpack.c.h.b16 %v189
    %v279 = vunpack.c.l.b16 %v190
    %v280 = vunpack.c.h.b16 %v190
    %v281 = vunpack.c.l.b16 %v191
    %v282 = vunpack.c.h.b16 %v191
    %v283 = vunpack.c.l.b16 %v192
    %v284 = vunpack.c.h.b16 %v192
    %v285 = vunpack.c.l.b16 %v193
    %v286 = vunpack.c.h.b16 %v193
    %v287 = vunpack.c.l.b16 %v194
    %v288 = vunpack.c.h.b16 %v194
    %v289 = vunpack.c.l.b16 %v195
    %v290 = vunpack.c.h.b16 %v195
    %v291 = vunpack.c.l.b16 %v196
    %v292 = vunpack.c.h.b16 %v196
    %v293 = vpack.c.b16 %v233, %v229
    %v294 = vpack.c.b16 %v234, %v230
    %v295 = vpack.c.b16 %v235, %v231
    %v296 = vpack.c.b16 %v236, %v232
    %v297 = vpack.c.b16 %v241, %v237
    %v298 = vpack.c.b16 %v242, %v238
    %v299 = vpack.c.b16 %v243, %v239
    %v300 = vpack.c.b16 %v244, %v240
    %v301 = vpack.c.b16 %v249, %v245
    %v302 = vpack.c.b16 %v250, %v246
    %v303 = vpack.c.b16 %v251, %v247
    %v304 = vpack.c.b16 %v252, %v248
    %v305 = vpack.c.b16 %v257, %v253
    %v306 = vpack.c.b16 %v258, %v254
    %v307 = vpack.c.b16 %v259, %v255
    %v308 = vpack.c.b16 %v260, %v256
    %v309 = vpack.c.b16 %v265, %v261
    %v310 = vpack.c.b16 %v266, %v262
    %v311 = vpack.c.b16 %v267, %v263
    %v312 = vpack.c.b16 %v268, %v264
    %v313 = vpack.c.b16 %v273, %v269
    %v314 = vpack.c.b16 %v274, %v270
    %v315 = vpack.c.b16 %v275, %v271
    %v316 = vpack.c.b16 %v276, %v272
    %v317 = vpack.c.b16 %v281, %v277
    %v318 = vpack.c.b16 %v282, %v278
    %v319 = vpack.c.b16 %v283, %v279
    %v320 = vpack.c.b16 %v284, %v280
    %v321 = vpack.c.b16 %v289, %v285
    %v322 = vpack.c.b16 %v290, %v286
    %v323 = vpack.c.b16 %v291, %v287
    %v324 = vpack.c.b16 %v292, %v288
    %v421 = vunpack.c.l.b16 %v85
    %v422 = vunpack.c.l.b16 %v86
    %v423 = vunpack.c.l.b16 %v87
    %v424 = vunpack.c.l.b16 %v88
    %v425 = vunpack.c.l.b16 %v89
    %v426 = vunpack.c.l.b16 %v90
    %v427 = vunpack.c.l.b16 %v91
    %v428 = vunpack.c.l.b16 %v92
    %v429 = vunpack.c.l.b16 %v93
    %v430 = vunpack.c.l.b16 %v94
    %v431 = vunpack.c.l.b16 %v95
    %v432 = vunpack.c.l.b16 %v96
    %v433 = vunpack.c.l.b16 %v97
    %v434 = vunpack.c.l.b16 %v98
    %v435 = vunpack.c.l.b16 %v99
    %v436 = vunpack.c.l.b16 %v100
    %v437 = vunpack.c.l.b16 %v101
    %v438 = vunpack.c.l.b16 %v102
    %v439 = vunpack.c.l.b16 %v103
    %v440 = vunpack.c.l.b16 %v104
    %v441 = vunpack.c.l.b16 %v105
    %v442 = vunpack.c.l.b16 %v106
    %v443 = vunpack.c.l.b16 %v107
    %v444 = vunpack.c.l.b16 %v108
    %v445 = vunpack.c.l.b16 %v109
    %v446 = vunpack.c.l.b16 %v110
    %v447 = vunpack.c.l.b16 %v111
    %v448 = vunpack.c.l.b16 %v112
    %v449 = vunpack.c.l.b16 %v113
    %v450 = vunpack.c.l.b16 %v114
    %v451 = vunpack.c.l.b16 %v115
    %v452 = vunpack.c.l.b16 %v116
    %v453 = vunpack.c.l.b16 %v117
    %v454 = vunpack.c.l.b16 %v118
    %v455 = vunpack.c.l.b16 %v119
    %v456 = vunpack.c.l.b16 %v120
    %v457 = vunpack.c.l.b16 %v121
    %v458 = vunpack.c.l.b16 %v122
    %v459 = vunpack.c.l.b16 %v123
    %v460 = vunpack.c.l.b16 %v124
    %v461 = vunpack.c.l.b16 %v125
    %v462 = vunpack.c.l.b16 %v126
    %v463 = vunpack.c.l.b16 %v127
    %v464 = vunpack.c.l.b16 %v128
    %v465 = vunpack.c.l.b16 %v129
    %v466 = vunpack.c.l.b16 %v130
    %v467 = vunpack.c.l.b16 %v131
    %v468 = vunpack.c.l.b16 %v132
    %v469 = vunpack.c.l.b16 %v133
    %v470 = vunpack.c.l.b16 %v134
    %v471 = vunpack.c.l.b16 %v135
    %v472 = vunpack.c.l.b16 %v136
    %v473 = vunpack.c.l.b16 %v137
    %v474 = vunpack.c.l.b16 %v138
    %v475 = vunpack.c.l.b16 %v139
    %v476 = vunpack.c.l.b16 %v140
    %v477 = vunpack.c.l.b16 %v141
    %v478 = vunpack.c.l.b16 %v142
    %v479 = vunpack.c.l.b16 %v143
    %v480 = vunpack.c.l.b16 %v144
    %v481 = vunpack.c.l.b16 %v145
    %v482 = vunpack.c.l.b16 %v146
    %v483 = vunpack.c.l.b16 %v147
    %v484 = vunpack.c.l.b16 %v148
    %v485 = vpack.c.b16 %v422, %v421
    %v486 = vpack.c.b16 %v424, %v423
    %v487 = vpack.c.b16 %v426, %v425
    %v488 = vpack.c.b16 %v428, %v427
    %v489 = vpack.c.b16 %v430, %v429
    %v490 = vpack.c.b16 %v432, %v431
    %v491 = vpack.c.b16 %v434, %v433
    %v492 = vpack.c.b16 %v436, %v435
    %v493 = vpack.c.b16 %v438, %v437
    %v494 = vpack.c.b16 %v440, %v439
    %v495 = vpack.c.b16 %v442, %v441
    %v496 = vpack.c.b16 %v444, %v443
    %v497 = vpack.c.b16 %v446, %v445
    %v498 = vpack.c.b16 %v448, %v447
    %v499 = vpack.c.b16 %v450, %v449
    %v500 = vpack.c.b16 %v452, %v451
    %v501 = vpack.c.b16 %v454, %v453
    %v502 = vpack.c.b16 %v456, %v455
    %v503 = vpack.c.b16 %v458, %v457
    %v504 = vpack.c.b16 %v460, %v459
    %v505 = vpack.c.b16 %v462, %v461
    %v506 = vpack.c.b16 %v464, %v463
    %v507 = vpack.c.b16 %v466, %v465
    %v508 = vpack.c.b16 %v468, %v467
    %v509 = vpack.c.b16 %v470, %v469
    %v510 = vpack.c.b16 %v472, %v471
    %v511 = vpack.c.b16 %v474, %v473
    %v512 = vpack.c.b16 %v476, %v475
    %v513 = vpack.c.b16 %v478, %v477
    %v514 = vpack.c.b16 %v480, %v479
    %v515 = vpack.c.b16 %v482, %v481
    %v516 = vpack.c.b16 %v484, %v483
    %549 = vmatprep.subr.bf16.mxu0 0
    %550 = vmatpush1.bf16.msra.mxu0 %v485
    %551 = vmatprep.subr.bf16.mxu0 0
    %552 = vmatpush1.bf16.msra.mxu0 %v486
    %553 = vmatprep.subr.bf16.mxu0 0
    %554 = vmatpush1.bf16.msra.mxu0 %v487
    %555 = vmatprep.subr.bf16.mxu0 0
    %556 = vmatpush1.bf16.msra.mxu0 %v488
    %557 = vmatprep.subr.bf16.mxu0 0
    %558 = vmatpush1.bf16.msra.mxu0 %v489
    %559 = vmatprep.subr.bf16.mxu0 0
    %560 = vmatpush1.bf16.msra.mxu0 %v490
    %561 = vmatprep.subr.bf16.mxu0 0
    %562 = vmatpush1.bf16.msra.mxu0 %v491
    %563 = vmatprep.subr.bf16.mxu0 0
    %564 = vmatpush1.bf16.msra.mxu0 %v492
    %565 = vmatprep.subr.bf16.mxu0 0
    %566 = vmatpush1.bf16.msra.mxu0 %v493
    %567 = vmatprep.subr.bf16.mxu0 0
    %568 = vmatpush1.bf16.msra.mxu0 %v494
    %569 = vmatprep.subr.bf16.mxu0 0
    %570 = vmatpush1.bf16.msra.mxu0 %v495
    %571 = vmatprep.subr.bf16.mxu0 0
    %572 = vmatpush1.bf16.msra.mxu0 %v496
    %573 = vmatprep.subr.bf16.mxu0 0
    %574 = vmatpush1.bf16.msra.mxu0 %v497
    %575 = vmatprep.subr.bf16.mxu0 0
    %576 = vmatpush1.bf16.msra.mxu0 %v498
    %577 = vmatprep.subr.bf16.mxu0 0
    %578 = vmatpush1.bf16.msra.mxu0 %v499
    %579 = vmatprep.subr.bf16.mxu0 0
    %580 = vmatpush1.bf16.msra.mxu0 %v500
    %581 = vmatprep.mubr.bf16.mxu0 %v294
    %582 = vmatmul.mubr.bf16.gmra.mrb[0].mxu0 %v293
    %v583 = vpop.f32.mrb[0].mxu0
    %v584 = vadd.f32 0.0, %v583
    %v585 = vpop.f32.mrb[0].mxu0
    %v586 = vpop.f32.mrb[0].mxu0
    %v587 = vadd.f32 0.0, %v586
    %v588 = vpop.f32.mrb[0].mxu0
    %589 = vmatprep.mubr.bf16.mxu0 %v298
    %590 = vmatmul.mubr.bf16.gmra.mrb[0].mxu0 %v297
    %v591 = vpop.f32.mrb[0].mxu0
    %v592 = vadd.f32 0.0, %v591
    %v593 = vpop.f32.mrb[0].mxu0
    %v594 = vpop.f32.mrb[0].mxu0
    %v595 = vadd.f32 0.0, %v594
    %v596 = vpop.f32.mrb[0].mxu0
    %597 = vmatprep.mubr.bf16.mxu0 %v302
    %598 = vmatmul.mubr.bf16.gmra.mrb[0].mxu0 %v301
    %v599 = vpop.f32.mrb[0].mxu0
    %v600 = vadd.f32 0.0, %v599
    %v601 = vpop.f32.mrb[0].mxu0
    %v602 = vpop.f32.mrb[0].mxu0
    %v603 = vadd.f32 0.0, %v602
    %v604 = vpop.f32.mrb[0].mxu0
    %605 = vmatprep.mubr.bf16.mxu0 %v306
    %606 = vmatmul.mubr.bf16.gmra.mrb[0].mxu0 %v305
    %v607 = vpop.f32.mrb[0].mxu0
    %v608 = vadd.f32 0.0, %v607
    %v609 = vpop.f32.mrb[0].mxu0
    %v610 = vpop.f32.mrb[0].mxu0
    %v611 = vadd.f32 0.0, %v610
    %v612 = vpop.f32.mrb[0].mxu0
    %613 = vmatprep.mubr.bf16.mxu0 %v310
    %614 = vmatmul.mubr.bf16.gmra.mrb[0].mxu0 %v309
    %v615 = vpop.f32.mrb[0].mxu0
    %v616 = vadd.f32 0.0, %v615
    %v617 = vpop.f32.mrb[0].mxu0
    %v618 = vpop.f32.mrb[0].mxu0
    %v619 = vadd.f32 0.0, %v618
    %v620 = vpop.f32.mrb[0].mxu0
    %621 = vmatprep.mubr.bf16.mxu0 %v314
    %622 = vmatmul.mubr.bf16.gmra.mrb[0].mxu0 %v313
    %v623 = vpop.f32.mrb[0].mxu0
    %v624 = vadd.f32 0.0, %v623
    %v625 = vpop.f32.mrb[0].mxu0
    %v626 = vpop.f32.mrb[0].mxu0
    %v627 = vadd.f32 0.0, %v626
    %v628 = vpop.f32.mrb[0].mxu0
    %629 = vmatprep.mubr.bf16.mxu0 %v318
    %630 = vmatmul.mubr.bf16.gmra.mrb[0].mxu0 %v317
    %v631 = vpop.f32.mrb[0].mxu0
    %v632 = vadd.f32 0.0, %v631
    %v633 = vpop.f32.mrb[0].mxu0
    %v634 = vpop.f32.mrb[0].mxu0
    %v635 = vadd.f32 0.0, %v634
    %v636 = vpop.f32.mrb[0].mxu0
    %637 = vmatprep.mubr.bf16.mxu0 %v322
    %638 = vmatmul.mubr.bf16.gmra.mrb[0].mxu0 %v321
    %v639 = vpop.f32.mrb[0].mxu0
    %v640 = vadd.f32 0.0, %v639
    %v641 = vpop.f32.mrb[0].mxu0
    %v642 = vpop.f32.mrb[0].mxu0
    %v643 = vadd.f32 0.0, %v642
    %v644 = vpop.f32.mrb[0].mxu0
    %645 = vdwg.mxu0
    %646 = vmatprep.subr.bf16.mxu0 0
    %647 = vmatpush1.bf16.msra.mxu0 %v501
    %648 = vmatprep.subr.bf16.mxu0 0
    %649 = vmatpush1.bf16.msra.mxu0 %v502
    %650 = vmatprep.subr.bf16.mxu0 0
    %651 = vmatpush1.bf16.msra.mxu0 %v503
    %652 = vmatprep.subr.bf16.mxu0 0
    %653 = vmatpush1.bf16.msra.mxu0 %v504
    %654 = vmatprep.subr.bf16.mxu0 0
    %655 = vmatpush1.bf16.msra.mxu0 %v505
    %656 = vmatprep.subr.bf16.mxu0 0
    %657 = vmatpush1.bf16.msra.mxu0 %v506
    %658 = vmatprep.subr.bf16.mxu0 0
    %659 = vmatpush1.bf16.msra.mxu0 %v507
    %660 = vmatprep.subr.bf16.mxu0 0
    %661 = vmatpush1.bf16.msra.mxu0 %v508
    %662 = vmatprep.subr.bf16.mxu0 0
    %663 = vmatpush1.bf16.msra.mxu0 %v509
    %664 = vmatprep.subr.bf16.mxu0 0
    %665 = vmatpush1.bf16.msra.mxu0 %v510
    %666 = vmatprep.subr.bf16.mxu0 0
    %667 = vmatpush1.bf16.msra.mxu0 %v511
    %668 = vmatprep.subr.bf16.mxu0 0
    %669 = vmatpush1.bf16.msra.mxu0 %v512
    %670 = vmatprep.subr.bf16.mxu0 0
    %671 = vmatpush1.bf16.msra.mxu0 %v513
    %672 = vmatprep.subr.bf16.mxu0 0
    %673 = vmatpush1.bf16.msra.mxu0 %v514
    %674 = vmatprep.subr.bf16.mxu0 0
    %675 = vmatpush1.bf16.msra.mxu0 %v515
    %676 = vmatprep.subr.bf16.mxu0 0
    %677 = vmatpush1.bf16.msra.mxu0 %v516
    %678 = vmatprep.mubr.bf16.mxu0 %v296
    %679 = vmatmul.mubr.bf16.gmra.mrb[0].mxu0 %v295
    %v680 = vpop.f32.mrb[0].mxu0
    %v681 = vadd.f32 %v584, %v680
    %v682 = vpop.f32.mrb[0].mxu0
    %v683 = vpop.f32.mrb[0].mxu0
    %v684 = vadd.f32 %v587, %v683
    %v685 = vpop.f32.mrb[0].mxu0
    %686 = vmatprep.mubr.bf16.mxu0 %v300
    %687 = vmatmul.mubr.bf16.gmra.mrb[0].mxu0 %v299
    %v688 = vpop.f32.mrb[0].mxu0
    %v689 = vadd.f32 %v592, %v688
    %v690 = vpop.f32.mrb[0].mxu0
    %v691 = vpop.f32.mrb[0].mxu0
    %v692 = vadd.f32 %v595, %v691
    %v693 = vpop.f32.mrb[0].mxu0
    %694 = vmatprep.mubr.bf16.mxu0 %v304
    %695 = vmatmul.mubr.bf16.gmra.mrb[0].mxu0 %v303
    %v696 = vpop.f32.mrb[0].mxu0
    %v697 = vadd.f32 %v600, %v696
    %v698 = vpop.f32.mrb[0].mxu0
    %v699 = vpop.f32.mrb[0].mxu0
    %v700 = vadd.f32 %v603, %v699
    %v701 = vpop.f32.mrb[0].mxu0
    %702 = vmatprep.mubr.bf16.mxu0 %v308
    %703 = vmatmul.mubr.bf16.gmra.mrb[0].mxu0 %v307
    %v704 = vpop.f32.mrb[0].mxu0
    %v705 = vadd.f32 %v608, %v704
    %v706 = vpop.f32.mrb[0].mxu0
    %v707 = vpop.f32.mrb[0].mxu0
    %v708 = vadd.f32 %v611, %v707
    %v709 = vpop.f32.mrb[0].mxu0
    %710 = vmatprep.mubr.bf16.mxu0 %v312
    %711 = vmatmul.mubr.bf16.gmra.mrb[0].mxu0 %v311
    %v712 = vpop.f32.mrb[0].mxu0
    %v713 = vadd.f32 %v616, %v712
    %v714 = vpop.f32.mrb[0].mxu0
    %v715 = vpop.f32.mrb[0].mxu0
    %v716 = vadd.f32 %v619, %v715
    %v717 = vpop.f32.mrb[0].mxu0
    %718 = vmatprep.mubr.bf16.mxu0 %v316
    %719 = vmatmul.mubr.bf16.gmra.mrb[0].mxu0 %v315
    %v720 = vpop.f32.mrb[0].mxu0
    %v721 = vadd.f32 %v624, %v720
    %v722 = vpop.f32.mrb[0].mxu0
    %v723 = vpop.f32.mrb[0].mxu0
    %v724 = vadd.f32 %v627, %v723
    %v725 = vpop.f32.mrb[0].mxu0
    %726 = vmatprep.mubr.bf16.mxu0 %v320
    %727 = vmatmul.mubr.bf16.gmra.mrb[0].mxu0 %v319
    %v728 = vpop.f32.mrb[0].mxu0
    %v729 = vadd.f32 %v632, %v728
    %v730 = vpop.f32.mrb[0].mxu0
    %v731 = vpop.f32.mrb[0].mxu0
    %v732 = vadd.f32 %v635, %v731
    %v733 = vpop.f32.mrb[0].mxu0
    %734 = vmatprep.mubr.bf16.mxu0 %v324
    %735 = vmatmul.mubr.bf16.gmra.mrb[0].mxu0 %v323
    %v736 = vpop.f32.mrb[0].mxu0
    %v737 = vadd.f32 %v640, %v736
    %v738 = vpop.f32.mrb[0].mxu0
    %v739 = vpop.f32.mrb[0].mxu0
    %v740 = vadd.f32 %v643, %v739
    %v741 = vpop.f32.mrb[0].mxu0
    %742 = vdwg.mxu0
    %v743 = vadd.f32 %v149, %v681
    %v744 = vadd.f32 %v150, %v684
    %v745 = vadd.f32 %v151, %v689
    %v746 = vadd.f32 %v152, %v692
    %v747 = vadd.f32 %v153, %v697
    %v748 = vadd.f32 %v154, %v700
    %v749 = vadd.f32 %v155, %v705
    %v750 = vadd.f32 %v156, %v708
    %v751 = vadd.f32 %v157, %v713
    %v752 = vadd.f32 %v158, %v716
    %v753 = vadd.f32 %v159, %v721
    %v754 = vadd.f32 %v160, %v724
    %v755 = vadd.f32 %v161, %v729
    %v756 = vadd.f32 %v162, %v732
    %v757 = vadd.f32 %v163, %v737
    %v758 = vadd.f32 %v164, %v740
    %759 = vst [vmem:[#allocation2] sm:$0xff] %v743
    %760 = vst [vmem:[#allocation2 + $0x8] sm:$0xff] %v744
    %761 = vst [vmem:[#allocation2 + $0x10] sm:$0xff] %v745
    %762 = vst [vmem:[#allocation2 + $0x18] sm:$0xff] %v746
    %763 = vst [vmem:[#allocation2 + $0x20] sm:$0xff] %v747
    %764 = vst [vmem:[#allocation2 + $0x28] sm:$0xff] %v748
    %765 = vst [vmem:[#allocation2 + $0x30] sm:$0xff] %v749
    %766 = vst [vmem:[#allocation2 + $0x38] sm:$0xff] %v750
    %767 = vst [vmem:[#allocation2 + $0x40] sm:$0xff] %v751
    %768 = vst [vmem:[#allocation2 + $0x48] sm:$0xff] %v752
    %769 = vst [vmem:[#allocation2 + $0x50] sm:$0xff] %v753
    %770 = vst [vmem:[#allocation2 + $0x58] sm:$0xff] %v754
    %771 = vst [vmem:[#allocation2 + $0x60] sm:$0xff] %v755
    %772 = vst [vmem:[#allocation2 + $0x68] sm:$0xff] %v756
    %773 = vst [vmem:[#allocation2 + $0x70] sm:$0xff] %v757
    %774 = vst [vmem:[#allocation2 + $0x78] sm:$0xff] %v758
    // Predicated region
    $region34: #{tpu_custom_call.1} parent=1 // pred_check
      %p775 = pneg %p60
    $region35: #{tpu_custom_call.1} parent=1 // pred_check_branch
      %777 = sbr.rel (%p775) target = $region37
    $region36: #{tpu_custom_call.1} parent=1 // pred_region
      %v778 = vld [vmem:[#allocation2] sm:$0xff]
      %v779 = vld [vmem:[#allocation2 + $0x8] sm:$0xff]
      %v780 = vld [vmem:[#allocation2 + $0x10] sm:$0xff]
      %v781 = vld [vmem:[#allocation2 + $0x18] sm:$0xff]
      %v782 = vld [vmem:[#allocation2 + $0x20] sm:$0xff]
      %v783 = vld [vmem:[#allocation2 + $0x28] sm:$0xff]
      %v784 = vld [vmem:[#allocation2 + $0x30] sm:$0xff]
      %v785 = vld [vmem:[#allocation2 + $0x38] sm:$0xff]
      %v786 = vld [vmem:[#allocation2 + $0x40] sm:$0xff]
      %v787 = vld [vmem:[#allocation2 + $0x48] sm:$0xff]
      %v788 = vld [vmem:[#allocation2 + $0x50] sm:$0xff]
      %v789 = vld [vmem:[#allocation2 + $0x58] sm:$0xff]
      %v790 = vld [vmem:[#allocation2 + $0x60] sm:$0xff]
      %v791 = vld [vmem:[#allocation2 + $0x68] sm:$0xff]
      %v792 = vld [vmem:[#allocation2 + $0x70] sm:$0xff]
      %v793 = vld [vmem:[#allocation2 + $0x78] sm:$0xff]
      %v794 = vpack.c.bf16 %v779, %v778
      %v795 = vpack.c.bf16 %v781, %v780
      %v796 = vpack.c.bf16 %v783, %v782
      %v797 = vpack.c.bf16 %v785, %v784
      %v798 = vpack.c.bf16 %v787, %v786
      %v799 = vpack.c.bf16 %v789, %v788
      %v800 = vpack.c.bf16 %v791, %v790
      %v801 = vpack.c.bf16 %v793, %v792
      %v802 = vld [vmem:[#allocation8] sm:$0xf]
      %v803 = vld [vmem:[#allocation8 + $0x4] sm:$0xf]
      %v804 = vld [vmem:[#allocation8 + $0x8] sm:$0xf]
      %v805 = vld [vmem:[#allocation8 + $0xc] sm:$0xf]
      %v806 = vld [vmem:[#allocation8 + $0x10] sm:$0xf]
      %v807 = vld [vmem:[#allocation8 + $0x14] sm:$0xf]
      %v808 = vld [vmem:[#allocation8 + $0x18] sm:$0xf]
      %v809 = vld [vmem:[#allocation8 + $0x1c] sm:$0xf]
      %v810 = vld [vmem:[#allocation8 + $0x20] sm:$0xf]
      %v811 = vld [vmem:[#allocation8 + $0x24] sm:$0xf]
      %v812 = vld [vmem:[#allocation8 + $0x28] sm:$0xf]
      %v813 = vld [vmem:[#allocation8 + $0x2c] sm:$0xf]
      %v814 = vld [vmem:[#allocation8 + $0x30] sm:$0xf]
      %v815 = vld [vmem:[#allocation8 + $0x34] sm:$0xf]
      %v816 = vld [vmem:[#allocation8 + $0x38] sm:$0xf]
      %v817 = vld [vmem:[#allocation8 + $0x3c] sm:$0xf]
      %v818 = vld [vmem:[%s3] sm:$0x1]
      %v820 = vlaneseq
      %v821 = vshrl.u32 %v820, 7
      %v822 = vsub.s32 0, %v821
      %v823 = vrot.slane %v818, %v822
      %v841 = vunpack.c.l.b16 %v802
      %v842 = vunpack.c.l.b16 %v803
      %v843 = vunpack.c.l.b16 %v804
      %v844 = vunpack.c.l.b16 %v805
      %v845 = vunpack.c.l.b16 %v806
      %v846 = vunpack.c.l.b16 %v807
      %v847 = vunpack.c.l.b16 %v808
      %v848 = vunpack.c.l.b16 %v809
      %v849 = vunpack.c.l.b16 %v810
      %v850 = vunpack.c.l.b16 %v811
      %v851 = vunpack.c.l.b16 %v812
      %v852 = vunpack.c.l.b16 %v813
      %v853 = vunpack.c.l.b16 %v814
      %v854 = vunpack.c.l.b16 %v815
      %v855 = vunpack.c.l.b16 %v816
      %v856 = vunpack.c.l.b16 %v817
      %v857 = vpack.c.b16 %v842, %v841
      %v858 = vpack.c.b16 %v844, %v843
      %v859 = vpack.c.b16 %v846, %v845
      %v860 = vpack.c.b16 %v848, %v847
      %v861 = vpack.c.b16 %v850, %v849
      %v862 = vpack.c.b16 %v852, %v851
      %v863 = vpack.c.b16 %v854, %v853
      %v864 = vpack.c.b16 %v856, %v855
      %873 = vmatprep.subr.bf16.mxu0 0
      %874 = vmatpush1.bf16.msra.mxu0 %v857
      %875 = vmatprep.subr.bf16.mxu0 0
      %876 = vmatpush1.bf16.msra.mxu0 %v858
      %877 = vmatprep.subr.bf16.mxu0 0
      %878 = vmatpush1.bf16.msra.mxu0 %v859
      %879 = vmatprep.subr.bf16.mxu0 0
      %880 = vmatpush1.bf16.msra.mxu0 %v860
      %881 = vmatprep.subr.bf16.mxu0 0
      %882 = vmatpush1.bf16.msra.mxu0 %v861
      %883 = vmatprep.subr.bf16.mxu0 0
      %884 = vmatpush1.bf16.msra.mxu0 %v862
      %885 = vmatprep.subr.bf16.mxu0 0
      %886 = vmatpush1.bf16.msra.mxu0 %v863
      %887 = vmatprep.subr.bf16.mxu0 0
      %888 = vmatpush1.bf16.msra.mxu0 %v864
      %889 = vmatprep.subr.bf16.mxu0 0
      %890 = vmatpush1.bf16.msra.mxu0 0
      %891 = vmatprep.subr.bf16.mxu0 0
      %892 = vmatpush1.bf16.msra.mxu0 0
      %893 = vmatprep.subr.bf16.mxu0 0
      %894 = vmatpush1.bf16.msra.mxu0 0
      %895 = vmatprep.subr.bf16.mxu0 0
      %896 = vmatpush1.bf16.msra.mxu0 0
      %897 = vmatprep.subr.bf16.mxu0 0
      %898 = vmatpush1.bf16.msra.mxu0 0
      %899 = vmatprep.subr.bf16.mxu0 0
      %900 = vmatpush1.bf16.msra.mxu0 0
      %901 = vmatprep.subr.bf16.mxu0 0
      %902 = vmatpush1.bf16.msra.mxu0 0
      %903 = vmatprep.subr.bf16.mxu0 0
      %904 = vmatpush1.bf16.msra.mxu0 0
      %905 = vmatprep.mubr.bf16.mxu0 0
      %906 = vmatmul.mubr.bf16.gmra.mrb[0].mxu0 %v794
      %v907 = vpop.f32.mrb[0].mxu0
      %v908 = vadd.f32 %v823, %v907
      %v909 = vpop.f32.mrb[0].mxu0
      %v910 = vpop.f32.mrb[0].mxu0
      %v911 = vadd.f32 %v823, %v910
      %v912 = vpop.f32.mrb[0].mxu0
      %913 = vmatprep.mubr.bf16.mxu0 0
      %914 = vmatmul.mubr.bf16.gmra.mrb[0].mxu0 %v795
      %v915 = vpop.f32.mrb[0].mxu0
      %v916 = vadd.f32 %v823, %v915
      %v917 = vpop.f32.mrb[0].mxu0
      %v918 = vpop.f32.mrb[0].mxu0
      %v919 = vadd.f32 %v823, %v918
      %v920 = vpop.f32.mrb[0].mxu0
      %921 = vmatprep.mubr.bf16.mxu0 0
      %922 = vmatmul.mubr.bf16.gmra.mrb[0].mxu0 %v796
      %v923 = vpop.f32.mrb[0].mxu0
      %v924 = vadd.f32 %v823, %v923
      %v925 = vpop.f32.mrb[0].mxu0
      %v926 = vpop.f32.mrb[0].mxu0
      %v927 = vadd.f32 %v823, %v926
      %v928 = vpop.f32.mrb[0].mxu0
      %929 = vmatprep.mubr.bf16.mxu0 0
      %930 = vmatmul.mubr.bf16.gmra.mrb[0].mxu0 %v797
      %v931 = vpop.f32.mrb[0].mxu0
      %v932 = vadd.f32 %v823, %v931
      %v933 = vpop.f32.mrb[0].mxu0
      %v934 = vpop.f32.mrb[0].mxu0
      %v935 = vadd.f32 %v823, %v934
      %v936 = vpop.f32.mrb[0].mxu0
      %937 = vmatprep.mubr.bf16.mxu0 0
      %938 = vmatmul.mubr.bf16.gmra.mrb[0].mxu0 %v798
      %v939 = vpop.f32.mrb[0].mxu0
      %v940 = vadd.f32 %v823, %v939
      %v941 = vpop.f32.mrb[0].mxu0
      %v942 = vpop.f32.mrb[0].mxu0
      %v943 = vadd.f32 %v823, %v942
      %v944 = vpop.f32.mrb[0].mxu0
      %945 = vmatprep.mubr.bf16.mxu0 0
      %946 = vmatmul.mubr.bf16.gmra.mrb[0].mxu0 %v799
      %v947 = vpop.f32.mrb[0].mxu0
      %v948 = vadd.f32 %v823, %v947
      %v949 = vpop.f32.mrb[0].mxu0
      %v950 = vpop.f32.mrb[0].mxu0
      %v951 = vadd.f32 %v823, %v950
      %v952 = vpop.f32.mrb[0].mxu0
      %953 = vmatprep.mubr.bf16.mxu0 0
      %954 = vmatmul.mubr.bf16.gmra.mrb[0].mxu0 %v800
      %v955 = vpop.f32.mrb[0].mxu0
      %v956 = vadd.f32 %v823, %v955
      %v957 = vpop.f32.mrb[0].mxu0
      %v958 = vpop.f32.mrb[0].mxu0
      %v959 = vadd.f32 %v823, %v958
      %v960 = vpop.f32.mrb[0].mxu0
      %961 = vmatprep.mubr.bf16.mxu0 0
      %962 = vmatmul.mubr.bf16.gmra.mrb[0].mxu0 %v801
      %v963 = vpop.f32.mrb[0].mxu0
      %v964 = vadd.f32 %v823, %v963
      %v965 = vpop.f32.mrb[0].mxu0
      %v966 = vpop.f32.mrb[0].mxu0
      %v967 = vadd.f32 %v823, %v966
      %v968 = vpop.f32.mrb[0].mxu0
      %969 = vdwg.mxu0
      %v970 = vmax.f32 %v908, 0.0
      %v971 = vmax.f32 %v911, 0.0
      %v972 = vmax.f32 %v916, 0.0
      %v973 = vmax.f32 %v919, 0.0
      %v974 = vmax.f32 %v924, 0.0
      %v975 = vmax.f32 %v927, 0.0
      %v976 = vmax.f32 %v932, 0.0
      %v977 = vmax.f32 %v935, 0.0
      %v978 = vmax.f32 %v940, 0.0
      %v979 = vmax.f32 %v943, 0.0
      %v980 = vmax.f32 %v948, 0.0
      %v981 = vmax.f32 %v951, 0.0
      %v982 = vmax.f32 %v956, 0.0
      %v983 = vmax.f32 %v959, 0.0
      %v984 = vmax.f32 %v964, 0.0
      %v985 = vmax.f32 %v967, 0.0
      %v986 = vpack.c.bf16 %v971, %v970
      %v987 = vpack.c.bf16 %v973, %v972
      %v988 = vpack.c.bf16 %v975, %v974
      %v989 = vpack.c.bf16 %v977, %v976
      %v990 = vpack.c.bf16 %v979, %v978
      %v991 = vpack.c.bf16 %v981, %v980
      %v992 = vpack.c.bf16 %v983, %v982
      %v993 = vpack.c.bf16 %v985, %v984
      %v1002 = vunpack.c.l.b16 %v986
      %v1003 = vunpack.c.h.b16 %v986
      %v1004 = vunpack.c.l.b16 %v987
      %v1005 = vunpack.c.h.b16 %v987
      %v1006 = vunpack.c.l.b16 %v988
      %v1007 = vunpack.c.h.b16 %v988
      %v1008 = vunpack.c.l.b16 %v989
      %v1009 = vunpack.c.h.b16 %v989
      %v1010 = vunpack.c.l.b16 %v990
      %v1011 = vunpack.c.h.b16 %v990
      %v1012 = vunpack.c.l.b16 %v991
      %v1013 = vunpack.c.h.b16 %v991
      %v1014 = vunpack.c.l.b16 %v992
      %v1015 = vunpack.c.h.b16 %v992
      %v1016 = vunpack.c.l.b16 %v993
      %v1017 = vunpack.c.h.b16 %v993
      %v1018 = vpack.c.b16 %v1002, %v1002
      %v1019 = vpack.c.b16 %v1003, %v1003
      %v1020 = vpack.c.b16 %v1004, %v1004
      %v1021 = vpack.c.b16 %v1005, %v1005
      %v1022 = vpack.c.b16 %v1006, %v1006
      %v1023 = vpack.c.b16 %v1007, %v1007
      %v1024 = vpack.c.b16 %v1008, %v1008
      %v1025 = vpack.c.b16 %v1009, %v1009
      %v1026 = vpack.c.b16 %v1010, %v1010
      %v1027 = vpack.c.b16 %v1011, %v1011
      %v1028 = vpack.c.b16 %v1012, %v1012
      %v1029 = vpack.c.b16 %v1013, %v1013
      %v1030 = vpack.c.b16 %v1014, %v1014
      %v1031 = vpack.c.b16 %v1015, %v1015
      %v1032 = vpack.c.b16 %v1016, %v1016
      %v1033 = vpack.c.b16 %v1017, %v1017
      %1050 = vst [vmem:[#allocation9] sm:$0xf] %v1018
      %1051 = vst [vmem:[#allocation9 + $0x4] sm:$0xf] %v1019
      %1052 = vst [vmem:[#allocation9 + $0x8] sm:$0xf] %v1020
      %1053 = vst [vmem:[#allocation9 + $0xc] sm:$0xf] %v1021
      %1054 = vst [vmem:[#allocation9 + $0x10] sm:$0xf] %v1022
      %1055 = vst [vmem:[#allocation9 + $0x14] sm:$0xf] %v1023
      %1056 = vst [vmem:[#allocation9 + $0x18] sm:$0xf] %v1024
      %1057 = vst [vmem:[#allocation9 + $0x1c] sm:$0xf] %v1025
      %1058 = vst [vmem:[#allocation9 + $0x20] sm:$0xf] %v1026
      %1059 = vst [vmem:[#allocation9 + $0x24] sm:$0xf] %v1027
      %1060 = vst [vmem:[#allocation9 + $0x28] sm:$0xf] %v1028
      %1061 = vst [vmem:[#allocation9 + $0x2c] sm:$0xf] %v1029
      %1062 = vst [vmem:[#allocation9 + $0x30] sm:$0xf] %v1030
      %1063 = vst [vmem:[#allocation9 + $0x34] sm:$0xf] %v1031
      %1064 = vst [vmem:[#allocation9 + $0x38] sm:$0xf] %v1032
      %1065 = vst [vmem:[#allocation9 + $0x3c] sm:$0xf] %v1033
    $region37: #{tpu_custom_call.1} parent=1 // pred_fallthru
      _
    // Predicated region
    $region38: #{tpu_custom_call.1} parent=1 // pred_check
      _
    $region39: #{tpu_custom_call.1} parent=1 // pred_check_branch
      %1067 = sbr.rel (0) target = $region41
    $region40: #{tpu_custom_call.1} parent=1 // pred_region
      %s1069 = ssub.s32 1024, 1024
      %1070 = vsyncadd [#allocation5], %s1069
      %s1071 = sshll.u32 [#allocation9], 4
      %s1072 = int_to_ptr.vmem [resolvable:$true] %s1071
      %1077 = dma.vmem_to_hbm [thread:$0]  %s1072, 1024, %s4, [#allocation5], 64, 64, 4
    $region41: #{tpu_custom_call.1} parent=1 // pred_fallthru
      _
    // Predicated region
    $region42: #{tpu_custom_call.1} parent=1 // pred_check
      _
    $region43: #{tpu_custom_call.1} parent=1 // pred_check_branch
      %1079 = sbr.rel (0) target = $region45
    $region44: #{tpu_custom_call.1} parent=1 // pred_region
      %1080 = dma.done [#allocation5], 1024
    $region45: #{tpu_custom_call.1} parent=1 // pred_fallthru
      _
    %1081 = vsyncpa [#allocation4], 1
    %1082 = vsyncpa [#allocation7], 1
    %1083 = vsyncpa [#allocation5], 1

</llo_original>
